<compile_context>
chip_gen: v7x
topology: tpu7x:2x2x1
jax: 0.10.0
libtpu: 0.0.40
codegen_flags: <defaults>
</compile_context>

<pallas_src>
import jax
import jax.numpy as jnp
from jax import lax
from jax.experimental import pallas as pl
from jax.experimental.pallas import tpu as pltpu

IN_DIM, H1, H2, OUT_DIM = 79, 128, 64, 1
IN_PAD = 80                                  # 79 -> 80 (multiple of 8/16)
SMALL_ROWS = H1 + H2 + H2 + OUT_DIM          # packed [b1 | b2 | w3 | b3] = 257


def _round_up(n, m):
    return ((n + m - 1) // m) * m


def _choose_block_b(B, cap):
    """Batch tile: multiple of 256, <= cap, >= 2 grid steps when B allows."""
    target = _round_up(max(B, 1), 256)
    if target <= 256:
        return 256
    # Split into at least two tiles so ("parallel",) shards across both v7x
    # TensorCores; harmless (sequential) on single-TC v5e/v6e.
    return max(256, min(cap, _round_up(pl.cdiv(target, 2), 256)))


def mlp_kernel(x_ref, w1_ref, w2_ref, small_ref, o_ref):
    # x_ref: (block_b, IN_PAD) batch-major, straight from HBM (no host
    # transpose).  Layer 1 contracts the last (feature) dim of both operands,
    # so the result comes out feature-major with batch on the lane axis.
    h1 = lax.dot_general(
        w1_ref[...], x_ref[...],
        dimension_numbers=(((1,), (1,)), ((), ())),
        preferred_element_type=jnp.float32)              # (H1, block_b) f32
    b1 = small_ref[0:H1, :]                              # (H1, 1) f32
    h1 = jnp.maximum(h1 + b1, 0.0)

    # Layer 2 (MXU): (H2, H1) @ (H1, block_b) -> (H2, block_b)
    h2 = jnp.dot(w2_ref[...], h1.astype(w2_ref.dtype),
                 preferred_element_type=jnp.float32)
    b2 = small_ref[H1:H1 + H2, :]                        # (H2, 1) f32
    h2 = jnp.maximum(h2 + b2, 0.0)

    # Output layer 64 -> 1: VPU broadcast-multiply + sublane reduction (XLU)
    # instead of an N=1 MXU matmul.  Result is lane-dense -> unmasked store.
    w3 = small_ref[H1 + H2:H1 + 2 * H2, :]               # (H2, 1) f32
    b3 = small_ref[H1 + 2 * H2:H1 + 2 * H2 + 1, :]       # (1, 1)  f32
    logits = jnp.sum(h2 * w3, axis=0, keepdims=True) + b3
    o_ref[...] = jax.nn.sigmoid(logits)                  # (1, block_b) f32


def mlp_forward(x, params, *, block_b=None, compute_dtype=jnp.bfloat16):
    """x: (B, 79) float32 -> (B, 1) float32. Params in PyTorch (out, in) layout."""
    w1, b1, w2, b2, w3, b3 = params
    B = x.shape[0]
    is_bf16 = jnp.dtype(compute_dtype) == jnp.dtype(jnp.bfloat16)
    cap = 8192 if is_bf16 else 4096
    if block_b is None:
        block_b = _choose_block_b(B, cap)
    assert block_b % 128 == 0
    B_pad = _round_up(B, block_b)
    grid = (B_pad // block_b,)

    # Host-side layout plumbing: pad features 79 -> 80 and batch to a tile
    # multiple; keep x batch-major (no transposed copy written to HBM).
    xp = jnp.pad(x, ((0, B_pad - B), (0, IN_PAD - IN_DIM))).astype(compute_dtype)
    w1p = jnp.pad(w1, ((0, 0), (0, IN_PAD - IN_DIM))).astype(compute_dtype)
    w2c = w2.astype(compute_dtype)
    small = jnp.concatenate(
        [b1.reshape(H1, 1),
         b2.reshape(H2, 1),
         w3.reshape(OUT_DIM, H2).T,            # (H2, 1) column
         b3.reshape(1, 1)],
        axis=0).astype(jnp.float32)            # (257, 1)

    out = pl.pallas_call(
        mlp_kernel,
        out_shape=jax.ShapeDtypeStruct((1, B_pad), jnp.float32),
        grid_spec=pltpu.PrefetchScalarGridSpec(
            num_scalar_prefetch=0,
            grid=grid,
            in_specs=[
                pl.BlockSpec((block_b, IN_PAD), lambda i: (i, 0)),   # x tile
                pl.BlockSpec((H1, IN_PAD), lambda i: (0, 0)),        # W1 (padded)
                pl.BlockSpec((H2, H1), lambda i: (0, 0)),            # W2
                pl.BlockSpec((SMALL_ROWS, 1), lambda i: (0, 0)),     # b1|b2|w3|b3
            ],
            out_specs=pl.BlockSpec((1, block_b), lambda i: (0, i)),  # lane-dense
        ),
        compiler_params=pltpu.CompilerParams(
            dimension_semantics=("parallel",),   # batch tiles shard across TCs
        ),
    )(xp, w1p, w2c, small)

    return out[0, :B].reshape(B, OUT_DIM)


def init_params(key):
    """Deterministic synthetic params, PyTorch nn.Linear convention (out, in)."""
    k1, k2, k3, k4, k5, k6 = jax.random.split(key, 6)
    s = 0.1
    w1 = s * jax.random.normal(k1, (H1, IN_DIM), jnp.float32)
    b1 = s * jax.random.normal(k2, (H1,), jnp.float32)
    w2 = s * jax.random.normal(k3, (H2, H1), jnp.float32)
    b2 = s * jax.random.normal(k4, (H2,), jnp.float32)
    w3 = s * jax.random.normal(k5, (OUT_DIM, H2), jnp.float32)
    b3 = s * jax.random.normal(k6, (OUT_DIM,), jnp.float32)
    return (w1, b1, w2, b2, w3, b3)


def mlp_reference(x, params):
    w1, b1, w2, b2, w3, b3 = params
    h1 = jnp.maximum(x @ w1.T + b1, 0.0)
    h2 = jnp.maximum(h1 @ w2.T + b2, 0.0)
    return jax.nn.sigmoid(h2 @ w3.T + b3)


if __name__ == "__main__":
    key = jax.random.PRNGKey(0)
    kx, kp = jax.random.split(key)
    params = init_params(kp)

    # Small test batch; wrapper pads it into one lane-dense 256-wide tile.
    B = 16
    x = jax.random.normal(kx, (B, IN_DIM), jnp.float32)
    ref = mlp_reference(x, params)

    # Default (bf16 compute, f32 accumulation / elementwise).
    out = jax.block_until_ready(mlp_forward(x, params))
    assert out.shape == (B, OUT_DIM)
    assert jnp.allclose(out, ref, atol=2e-2), "bf16 mismatch vs reference"

    # f32 compute path (tight tolerance).
    out_f32 = jax.block_until_ready(
        mlp_forward(x, params, compute_dtype=jnp.float32))
    assert jnp.allclose(out_f32, ref, atol=1e-4, rtol=1e-4), \
        "f32 mismatch vs reference"

    # Ragged batch size (not a multiple of the tile) handled by wrapper padding.
    xr = jax.random.normal(jax.random.PRNGKey(1), (37, IN_DIM), jnp.float32)
    outr = jax.block_until_ready(
        mlp_forward(xr, params, compute_dtype=jnp.float32))
    assert outr.shape == (37, OUT_DIM)
    assert jnp.allclose(outr, mlp_reference(xr, params), atol=1e-4, rtol=1e-4), \
        "ragged-batch mismatch vs reference"

    # Larger batch exercising multiple grid steps (>= 2 tiles -> both v7x TCs).
    xl = jax.random.normal(jax.random.PRNGKey(2), (600, IN_DIM), jnp.float32)
    outl = jax.block_until_ready(mlp_forward(xl, params))
    assert outl.shape == (600, OUT_DIM)
    assert jnp.allclose(outl, mlp_reference(xl, params), atol=2e-2), \
        "multi-tile mismatch vs reference"

    print("KERNEL_OK")
</pallas_src>

<mosaic_0001>
module attributes {stable_mosaic.version = 11 : i64} {
  func.func @mlp_kernel(%arg0: i32, %arg1: memref<256x80xbf16, #tpu.memory_space<vmem>>, %arg2: memref<128x80xbf16, #tpu.memory_space<vmem>>, %arg3: memref<64x128xbf16, #tpu.memory_space<vmem>>, %arg4: memref<257x1xf32, #tpu.memory_space<vmem>>, %arg5: memref<1x256xf32, #tpu.memory_space<vmem>>) attributes {dimension_semantics = [#tpu.dimension_semantics<parallel>], iteration_bounds = array<i64: 1>, scalar_prefetch = 0 : i64, scratch_operands = 0 : i64, tpu.core_type = #tpu.core_type<tc>, window_params = [{transform_indices = @transform_0, window_bounds = array<i64: 256, 80>}, {pipeline_mode = #tpu.pipeline_mode<synchronous>, transform_indices = @transform_1, window_bounds = array<i64: 128, 80>}, {pipeline_mode = #tpu.pipeline_mode<synchronous>, transform_indices = @transform_2, window_bounds = array<i64: 64, 128>}, {pipeline_mode = #tpu.pipeline_mode<synchronous>, transform_indices = @transform_3, window_bounds = array<i64: 257, 1>}, {transform_indices = @transform_4, window_bounds = array<i64: 1, 256>}]} {
    %c0 = arith.constant 0 : index
    %c0_0 = arith.constant 0 : index
    %0 = vector.load %arg2[%c0, %c0_0] : memref<128x80xbf16, #tpu.memory_space<vmem>>, vector<128x80xbf16>
    %c0_1 = arith.constant 0 : index
    %c0_2 = arith.constant 0 : index
    %1 = vector.load %arg1[%c0_1, %c0_2] : memref<256x80xbf16, #tpu.memory_space<vmem>>, vector<256x80xbf16>
    %cst = arith.constant dense<0.000000e+00> : vector<128x256xf32>
    %2 = tpu.matmul %0, %1, %cst {dimension_numbers = #tpu.dot_dimension_numbers<[1], [1], [0], [0], [0, 0, 1, 0], [], []>} : vector<128x80xbf16>, vector<256x80xbf16>, vector<128x256xf32> -> vector<128x256xf32>
    %c0_3 = arith.constant 0 : index
    %c0_4 = arith.constant 0 : index
    %3 = vector.load %arg4[%c0_3, %c0_4] : memref<257x1xf32, #tpu.memory_space<vmem>>, vector<128x1xf32>
    %4 = vector.broadcast %3 : vector<128x1xf32> to vector<128x256xf32>
    %5 = arith.addf %2, %4 : vector<128x256xf32>
    %cst_5 = arith.constant 0.000000e+00 : f32
    %6 = vector.broadcast %cst_5 : f32 to vector<128x256xf32>
    %7 = arith.maximumf %5, %6 : vector<128x256xf32>
    %c0_6 = arith.constant 0 : index
    %c0_7 = arith.constant 0 : index
    %8 = vector.load %arg3[%c0_6, %c0_7] : memref<64x128xbf16, #tpu.memory_space<vmem>>, vector<64x128xbf16>
    %9 = arith.truncf %7 : vector<128x256xf32> to vector<128x256xbf16>
    %cst_8 = arith.constant dense<0.000000e+00> : vector<64x256xf32>
    %10 = tpu.matmul %8, %9, %cst_8 {dimension_numbers = #tpu.dot_dimension_numbers<[1], [0], [0], [1], [0, 0, 1, 1], [], []>} : vector<64x128xbf16>, vector<128x256xbf16>, vector<64x256xf32> -> vector<64x256xf32>
    %c128 = arith.constant 128 : index
    %c0_9 = arith.constant 0 : index
    %11 = vector.load %arg4[%c128, %c0_9] : memref<257x1xf32, #tpu.memory_space<vmem>>, vector<64x1xf32>
    %12 = vector.broadcast %11 : vector<64x1xf32> to vector<64x256xf32>
    %13 = arith.addf %10, %12 : vector<64x256xf32>
    %cst_10 = arith.constant 0.000000e+00 : f32
    %14 = vector.broadcast %cst_10 : f32 to vector<64x256xf32>
    %15 = arith.maximumf %13, %14 : vector<64x256xf32>
    %c192 = arith.constant 192 : index
    %c0_11 = arith.constant 0 : index
    %16 = vector.load %arg4[%c192, %c0_11] : memref<257x1xf32, #tpu.memory_space<vmem>>, vector<64x1xf32>
    %c256 = arith.constant 256 : index
    %c0_12 = arith.constant 0 : index
    %17 = vector.load %arg4[%c256, %c0_12] : memref<257x1xf32, #tpu.memory_space<vmem>>, vector<1x1xf32>
    %18 = vector.broadcast %16 : vector<64x1xf32> to vector<64x256xf32>
    %19 = arith.mulf %15, %18 : vector<64x256xf32>
    %cst_13 = arith.constant dense<0.000000e+00> : vector<256xf32>
    %20 = vector.multi_reduction <add>, %19, %cst_13 [0] : vector<64x256xf32> to vector<256xf32>
    %21 = vector.shape_cast %20 : vector<256xf32> to vector<1x256xf32>
    %22 = vector.broadcast %17 : vector<1x1xf32> to vector<1x256xf32>
    %23 = arith.addf %21, %22 : vector<1x256xf32>
    %24 = arith.negf %23 : vector<1x256xf32>
    %25 = math.exp %24 : vector<1x256xf32>
    %cst_14 = arith.constant 1.000000e+00 : f32
    %26 = vector.broadcast %cst_14 : f32 to vector<1x256xf32>
    %27 = arith.addf %26, %25 : vector<1x256xf32>
    %28 = arith.divf %26, %27 : vector<1x256xf32>
    %c0_15 = arith.constant 0 : index
    %c0_16 = arith.constant 0 : index
    %29 = vector.load %arg5[%c0_15, %c0_16] : memref<1x256xf32, #tpu.memory_space<vmem>>, vector<1x256xf32>
    tpu.vector_store %arg5[%c0_15, %c0_16], %28 {strides = array<i32>} : memref<1x256xf32, #tpu.memory_space<vmem>>, vector<1x256xf32>,
    return
  }
  func.func @transform_0(%arg0: i32) -> (i32, i32) {
    %c0_i32 = arith.constant 0 : i32
    %c0_i32_0 = arith.constant 0 : i32
    return %arg0, %c0_i32 : i32, i32
  }
  func.func @transform_1(%arg0: i32) -> (i32, i32) {
    %c0_i32 = arith.constant 0 : i32
    %c0_i32_0 = arith.constant 0 : i32
    %c0_i32_1 = arith.constant 0 : i32
    return %c0_i32, %c0_i32_0 : i32, i32
  }
  func.func @transform_2(%arg0: i32) -> (i32, i32) {
    %c0_i32 = arith.constant 0 : i32
    %c0_i32_0 = arith.constant 0 : i32
    %c0_i32_1 = arith.constant 0 : i32
    return %c0_i32, %c0_i32_0 : i32, i32
  }
  func.func @transform_3(%arg0: i32) -> (i32, i32) {
    %c0_i32 = arith.constant 0 : i32
    %c0_i32_0 = arith.constant 0 : i32
    %c0_i32_1 = arith.constant 0 : i32
    return %c0_i32, %c0_i32_0 : i32, i32
  }
  func.func @transform_4(%arg0: i32) -> (i32, i32) {
    %c0_i32 = arith.constant 0 : i32
    %c0_i32_0 = arith.constant 0 : i32
    return %c0_i32, %arg0 : i32, i32
  }
}

</mosaic_0001>

<llo_original>
// kernel: tpu_custom_call.1
$region0: #{tpu_custom_call.1}
  #allocation0 [shape = 'u32[]', space=smem, size = 0x4, offset = 0x4, fixed_abs, tag = 'smem constant byte address 0x4 - core index']
  #allocation1 [shape = 'u32[144,128]{1,0:T(1,128)}', space=vmem, size = 0x12000, scoped, tag = 'internal scratch']
  %s0 = inlined_call_operand.vmem [shape: bf16[256,80], index: 0, kind: input, shape index: {}]
  %s1 = inlined_call_operand.vmem [shape: bf16[128,80], index: 1, kind: input, shape index: {}]
  %s2 = inlined_call_operand.vmem [shape: bf16[64,128], index: 2, kind: input, shape index: {}]
  %s3 = inlined_call_operand.vmem [shape: f32[257,1], index: 3, kind: input, shape index: {}]
  %s4 = inlined_call_operand.hbm [shape: f32[1,256], index: 4, kind: output, shape index: {}]
  %s5 = sld [smem:[#allocation0]]
  $region26: #{tpu_custom_call.1} parent=0
    _
  %s7 = ssub.s32 1, %s5
  %s8 = scalar_select 0, %s7, %s5
  $region1: #{tpu_custom_call.1} parent=0
    #allocation2 [shape = 'u8[1024]{0}', space=vmem, size = 0x400, scoped, tag = 'output window, operand 0, single buffered']
    #allocation3 [shape = 's32[1]{0}', space=sflag, size = 0x4, scoped, tag = 'scoped memory for tpu_custom_call.1']
    %9 = vsyncpa [#allocation3], 0
    // Predicated region
    $region2: #{tpu_custom_call.1} parent=1 // pred_check
      _
    $region3: #{tpu_custom_call.1} parent=1 // pred_check_branch
      %11 = sbr.rel (0) target = $region5
    $region4: #{tpu_custom_call.1} parent=1 // pred_region
      _
    $region5: #{tpu_custom_call.1} parent=1 // pred_fallthru
      _
    // Predicated region
    $region6: #{tpu_custom_call.1} parent=1 // pred_check
      _
    $region7: #{tpu_custom_call.1} parent=1 // pred_check_branch
      %13 = sbr.rel (0) target = $region9
    $region8: #{tpu_custom_call.1} parent=1 // pred_region
      _
    $region9: #{tpu_custom_call.1} parent=1 // pred_fallthru
      _
    // Predicated region
    $region10: #{tpu_custom_call.1} parent=1 // pred_check
      _
    $region11: #{tpu_custom_call.1} parent=1 // pred_check_branch
      %15 = sbr.rel (0) target = $region13
    $region12: #{tpu_custom_call.1} parent=1 // pred_region
      _
    $region13: #{tpu_custom_call.1} parent=1 // pred_fallthru
      _
    // Predicated region
    $region14: #{tpu_custom_call.1} parent=1 // pred_check
      _
    $region15: #{tpu_custom_call.1} parent=1 // pred_check_branch
      %17 = sbr.rel (0) target = $region17
    $region16: #{tpu_custom_call.1} parent=1 // pred_region
      _
    $region17: #{tpu_custom_call.1} parent=1 // pred_fallthru
      _
    %v19 = vld [vmem:[%s1] sm:$0xf]
    %v20 = vld [vmem:[%s1 + $0x4] sm:$0xf]
    %v21 = vld [vmem:[%s1 + $0x8] sm:$0xf]
    %v22 = vld [vmem:[%s1 + $0xc] sm:$0xf]
    %v23 = vld [vmem:[%s1 + $0x10] sm:$0xf]
    %v24 = vld [vmem:[%s1 + $0x14] sm:$0xf]
    %v25 = vld [vmem:[%s1 + $0x18] sm:$0xf]
    %v26 = vld [vmem:[%s1 + $0x1c] sm:$0xf]
    %v27 = vld [vmem:[%s1 + $0x20] sm:$0xf]
    %v28 = vld [vmem:[%s1 + $0x24] sm:$0xf]
    %v29 = vld [vmem:[%s1 + $0x28] sm:$0xf]
    %v30 = vld [vmem:[%s1 + $0x2c] sm:$0xf]
    %v31 = vld [vmem:[%s1 + $0x30] sm:$0xf]
    %v32 = vld [vmem:[%s1 + $0x34] sm:$0xf]
    %v33 = vld [vmem:[%s1 + $0x38] sm:$0xf]
    %v34 = vld [vmem:[%s1 + $0x3c] sm:$0xf]
    %v35 = vld [vmem:[%s0] sm:$0xf]
    %v36 = vld [vmem:[%s0 + $0x4] sm:$0xf]
    %v37 = vld [vmem:[%s0 + $0x8] sm:$0xf]
    %v38 = vld [vmem:[%s0 + $0xc] sm:$0xf]
    %v39 = vld [vmem:[%s0 + $0x10] sm:$0xf]
    %v40 = vld [vmem:[%s0 + $0x14] sm:$0xf]
    %v41 = vld [vmem:[%s0 + $0x18] sm:$0xf]
    %v42 = vld [vmem:[%s0 + $0x1c] sm:$0xf]
    %v43 = vld [vmem:[%s0 + $0x20] sm:$0xf]
    %v44 = vld [vmem:[%s0 + $0x24] sm:$0xf]
    %v45 = vld [vmem:[%s0 + $0x28] sm:$0xf]
    %v46 = vld [vmem:[%s0 + $0x2c] sm:$0xf]
    %v47 = vld [vmem:[%s0 + $0x30] sm:$0xf]
    %v48 = vld [vmem:[%s0 + $0x34] sm:$0xf]
    %v49 = vld [vmem:[%s0 + $0x38] sm:$0xf]
    %v50 = vld [vmem:[%s0 + $0x3c] sm:$0xf]
    %v51 = vld [vmem:[%s0 + $0x40] sm:$0xf]
    %v52 = vld [vmem:[%s0 + $0x44] sm:$0xf]
    %v53 = vld [vmem:[%s0 + $0x48] sm:$0xf]
    %v54 = vld [vmem:[%s0 + $0x4c] sm:$0xf]
    %v55 = vld [vmem:[%s0 + $0x50] sm:$0xf]
    %v56 = vld [vmem:[%s0 + $0x54] sm:$0xf]
    %v57 = vld [vmem:[%s0 + $0x58] sm:$0xf]
    %v58 = vld [vmem:[%s0 + $0x5c] sm:$0xf]
    %v59 = vld [vmem:[%s0 + $0x60] sm:$0xf]
    %v60 = vld [vmem:[%s0 + $0x64] sm:$0xf]
    %v61 = vld [vmem:[%s0 + $0x68] sm:$0xf]
    %v62 = vld [vmem:[%s0 + $0x6c] sm:$0xf]
    %v63 = vld [vmem:[%s0 + $0x70] sm:$0xf]
    %v64 = vld [vmem:[%s0 + $0x74] sm:$0xf]
    %v65 = vld [vmem:[%s0 + $0x78] sm:$0xf]
    %v66 = vld [vmem:[%s0 + $0x7c] sm:$0xf]
    %v67 = vld [vmem:[%s3] sm:$0xff]
    %v68 = vld [vmem:[%s3 + $0x8] sm:$0xff]
    %v69 = vld [vmem:[%s3 + $0x10] sm:$0xff]
    %v70 = vld [vmem:[%s3 + $0x18] sm:$0xff]
    %v71 = vld [vmem:[%s3 + $0x20] sm:$0xff]
    %v72 = vld [vmem:[%s3 + $0x28] sm:$0xff]
    %v73 = vld [vmem:[%s3 + $0x30] sm:$0xff]
    %v74 = vld [vmem:[%s3 + $0x38] sm:$0xff]
    %v75 = vld [vmem:[%s3 + $0x40] sm:$0xff]
    %v76 = vld [vmem:[%s3 + $0x48] sm:$0xff]
    %v77 = vld [vmem:[%s3 + $0x50] sm:$0xff]
    %v78 = vld [vmem:[%s3 + $0x58] sm:$0xff]
    %v79 = vld [vmem:[%s3 + $0x60] sm:$0xff]
    %v80 = vld [vmem:[%s3 + $0x68] sm:$0xff]
    %v81 = vld [vmem:[%s3 + $0x70] sm:$0xff]
    %v82 = vld [vmem:[%s3 + $0x78] sm:$0xff]
    %84 = vset.pattern.permute.xlu0 0
    %85 = vperm.xlu0 %84, %v67
    %v86 = vpop.permute.xlu0 %85
    %89 = vset.pattern.permute.xlu0 0
    %90 = vperm.xlu0 %89, %v68
    %v91 = vpop.permute.xlu0 %90
    %94 = vset.pattern.permute.xlu0 0
    %95 = vperm.xlu0 %94, %v69
    %v96 = vpop.permute.xlu0 %95
    %99 = vset.pattern.permute.xlu0 0
    %100 = vperm.xlu0 %99, %v70
    %v101 = vpop.permute.xlu0 %100
    %104 = vset.pattern.permute.xlu0 0
    %105 = vperm.xlu0 %104, %v71
    %v106 = vpop.permute.xlu0 %105
    %109 = vset.pattern.permute.xlu0 0
    %110 = vperm.xlu0 %109, %v72
    %v111 = vpop.permute.xlu0 %110
    %114 = vset.pattern.permute.xlu0 0
    %115 = vperm.xlu0 %114, %v73
    %v116 = vpop.permute.xlu0 %115
    %119 = vset.pattern.permute.xlu0 0
    %120 = vperm.xlu0 %119, %v74
    %v121 = vpop.permute.xlu0 %120
    %124 = vset.pattern.permute.xlu0 0
    %125 = vperm.xlu0 %124, %v75
    %v126 = vpop.permute.xlu0 %125
    %129 = vset.pattern.permute.xlu0 0
    %130 = vperm.xlu0 %129, %v76
    %v131 = vpop.permute.xlu0 %130
    %134 = vset.pattern.permute.xlu0 0
    %135 = vperm.xlu0 %134, %v77
    %v136 = vpop.permute.xlu0 %135
    %139 = vset.pattern.permute.xlu0 0
    %140 = vperm.xlu0 %139, %v78
    %v141 = vpop.permute.xlu0 %140
    %144 = vset.pattern.permute.xlu0 0
    %145 = vperm.xlu0 %144, %v79
    %v146 = vpop.permute.xlu0 %145
    %149 = vset.pattern.permute.xlu0 0
    %150 = vperm.xlu0 %149, %v80
    %v151 = vpop.permute.xlu0 %150
    %154 = vset.pattern.permute.xlu0 0
    %155 = vperm.xlu0 %154, %v81
    %v156 = vpop.permute.xlu0 %155
    %159 = vset.pattern.permute.xlu0 0
    %160 = vperm.xlu0 %159, %v82
    %v161 = vpop.permute.xlu0 %160
    %v179 = vunpack.c.l.b16 %v19
    %v180 = vunpack.c.l.b16 %v20
    %v181 = vunpack.c.l.b16 %v21
    %v182 = vunpack.c.l.b16 %v22
    %v183 = vunpack.c.l.b16 %v23
    %v184 = vunpack.c.l.b16 %v24
    %v185 = vunpack.c.l.b16 %v25
    %v186 = vunpack.c.l.b16 %v26
    %v187 = vunpack.c.l.b16 %v27
    %v188 = vunpack.c.l.b16 %v28
    %v189 = vunpack.c.l.b16 %v29
    %v190 = vunpack.c.l.b16 %v30
    %v191 = vunpack.c.l.b16 %v31
    %v192 = vunpack.c.l.b16 %v32
    %v193 = vunpack.c.l.b16 %v33
    %v194 = vunpack.c.l.b16 %v34
    %v195 = vpack.c.b16 %v180, %v179
    %v196 = vpack.c.b16 %v182, %v181
    %v197 = vpack.c.b16 %v184, %v183
    %v198 = vpack.c.b16 %v186, %v185
    %v199 = vpack.c.b16 %v188, %v187
    %v200 = vpack.c.b16 %v190, %v189
    %v201 = vpack.c.b16 %v192, %v191
    %v202 = vpack.c.b16 %v194, %v193
    %v235 = vunpack.c.l.b16 %v35
    %v236 = vunpack.c.l.b16 %v36
    %v237 = vunpack.c.l.b16 %v37
    %v238 = vunpack.c.l.b16 %v38
    %v239 = vunpack.c.l.b16 %v39
    %v240 = vunpack.c.l.b16 %v40
    %v241 = vunpack.c.l.b16 %v41
    %v242 = vunpack.c.l.b16 %v42
    %v243 = vunpack.c.l.b16 %v43
    %v244 = vunpack.c.l.b16 %v44
    %v245 = vunpack.c.l.b16 %v45
    %v246 = vunpack.c.l.b16 %v46
    %v247 = vunpack.c.l.b16 %v47
    %v248 = vunpack.c.l.b16 %v48
    %v249 = vunpack.c.l.b16 %v49
    %v250 = vunpack.c.l.b16 %v50
    %v251 = vunpack.c.l.b16 %v51
    %v252 = vunpack.c.l.b16 %v52
    %v253 = vunpack.c.l.b16 %v53
    %v254 = vunpack.c.l.b16 %v54
    %v255 = vunpack.c.l.b16 %v55
    %v256 = vunpack.c.l.b16 %v56
    %v257 = vunpack.c.l.b16 %v57
    %v258 = vunpack.c.l.b16 %v58
    %v259 = vunpack.c.l.b16 %v59
    %v260 = vunpack.c.l.b16 %v60
    %v261 = vunpack.c.l.b16 %v61
    %v262 = vunpack.c.l.b16 %v62
    %v263 = vunpack.c.l.b16 %v63
    %v264 = vunpack.c.l.b16 %v64
    %v265 = vunpack.c.l.b16 %v65
    %v266 = vunpack.c.l.b16 %v66
    %v267 = vpack.c.b16 %v236, %v235
    %v268 = vpack.c.b16 %v238, %v237
    %v269 = vpack.c.b16 %v240, %v239
    %v270 = vpack.c.b16 %v242, %v241
    %v271 = vpack.c.b16 %v244, %v243
    %v272 = vpack.c.b16 %v246, %v245
    %v273 = vpack.c.b16 %v248, %v247
    %v274 = vpack.c.b16 %v250, %v249
    %v275 = vpack.c.b16 %v252, %v251
    %v276 = vpack.c.b16 %v254, %v253
    %v277 = vpack.c.b16 %v256, %v255
    %v278 = vpack.c.b16 %v258, %v257
    %v279 = vpack.c.b16 %v260, %v259
    %v280 = vpack.c.b16 %v262, %v261
    %v281 = vpack.c.b16 %v264, %v263
    %v282 = vpack.c.b16 %v266, %v265
    %vm283 = vcmask 654336
    %v285 = vsel %vm283, %v195, 0
    %v288 = vsel %vm283, %v196, 0
    %v291 = vsel %vm283, %v197, 0
    %v294 = vsel %vm283, %v198, 0
    %v297 = vsel %vm283, %v199, 0
    %v300 = vsel %vm283, %v200, 0
    %v303 = vsel %vm283, %v201, 0
    %v306 = vsel %vm283, %v202, 0
    %v309 = vsel %vm283, %v267, 0
    %v312 = vsel %vm283, %v268, 0
    %v315 = vsel %vm283, %v269, 0
    %v318 = vsel %vm283, %v270, 0
    %v321 = vsel %vm283, %v271, 0
    %v324 = vsel %vm283, %v272, 0
    %v327 = vsel %vm283, %v273, 0
    %v330 = vsel %vm283, %v274, 0
    %v333 = vsel %vm283, %v275, 0
    %v336 = vsel %vm283, %v276, 0
    %v339 = vsel %vm283, %v277, 0
    %v342 = vsel %vm283, %v278, 0
    %v345 = vsel %vm283, %v279, 0
    %v348 = vsel %vm283, %v280, 0
    %v351 = vsel %vm283, %v281, 0
    %v354 = vsel %vm283, %v282, 0
    %356 = vmatprep.subr.bf16.mxu0 0
    %357 = vmatpush1.bf16.xpose.msra.mxu0 %v309
    %358 = vmatprep.subr.bf16.mxu0 0
    %359 = vmatpush1.bf16.xpose.msra.mxu0 %v312
    %360 = vmatprep.subr.bf16.mxu0 0
    %361 = vmatpush1.bf16.xpose.msra.mxu0 %v315
    %362 = vmatprep.subr.bf16.mxu0 0
    %363 = vmatpush1.bf16.xpose.msra.mxu0 %v318
    %364 = vmatprep.subr.bf16.mxu0 0
    %365 = vmatpush1.bf16.xpose.msra.mxu0 %v321
    %366 = vmatprep.subr.bf16.mxu0 0
    %367 = vmatpush1.bf16.xpose.msra.mxu0 %v324
    %368 = vmatprep.subr.bf16.mxu0 0
    %369 = vmatpush1.bf16.xpose.msra.mxu0 %v327
    %370 = vmatprep.subr.bf16.mxu0 0
    %371 = vmatpush1.bf16.xpose.msra.mxu0 %v330
    %372 = vmatprep.subr.bf16.mxu0 0
    %373 = vmatpush1.bf16.xpose.msra.mxu0 %v333
    %374 = vmatprep.subr.bf16.mxu0 0
    %375 = vmatpush1.bf16.xpose.msra.mxu0 %v336
    %376 = vmatprep.subr.bf16.mxu0 0
    %377 = vmatpush1.bf16.xpose.msra.mxu0 %v339
    %378 = vmatprep.subr.bf16.mxu0 0
    %379 = vmatpush1.bf16.xpose.msra.mxu0 %v342
    %380 = vmatprep.subr.bf16.mxu0 0
    %381 = vmatpush1.bf16.xpose.msra.mxu0 %v345
    %382 = vmatprep.subr.bf16.mxu0 0
    %383 = vmatpush1.bf16.xpose.msra.mxu0 %v348
    %384 = vmatprep.subr.bf16.mxu0 0
    %385 = vmatpush1.bf16.xpose.msra.mxu0 %v351
    %386 = vmatprep.subr.bf16.mxu0 0
    %387 = vmatpush1.bf16.xpose.msra.mxu0 %v354
    %388 = vmatprep.mubr.bf16.mxu0 0
    %389 = vmatmul.mubr.bf16.gmra.mrb[0].mxu0 %v285
    %v390 = vpop.f32.mrb[0].mxu0
    %v391 = vadd.f32 %v86, %v390
    %v392 = vpop.f32.mrb[0].mxu0
    %v393 = vadd.f32 %v86, %v392
    %v394 = vpop.f32.mrb[0].mxu0
    %v395 = vadd.f32 %v91, %v394
    %v396 = vpop.f32.mrb[0].mxu0
    %v397 = vadd.f32 %v91, %v396
    %398 = vmatprep.mubr.bf16.mxu0 0
    %399 = vmatmul.mubr.bf16.gmra.mrb[0].mxu0 %v288
    %v400 = vpop.f32.mrb[0].mxu0
    %v401 = vadd.f32 %v96, %v400
    %v402 = vpop.f32.mrb[0].mxu0
    %v403 = vadd.f32 %v96, %v402
    %v404 = vpop.f32.mrb[0].mxu0
    %v405 = vadd.f32 %v101, %v404
    %v406 = vpop.f32.mrb[0].mxu0
    %v407 = vadd.f32 %v101, %v406
    %408 = vmatprep.mubr.bf16.mxu0 0
    %409 = vmatmul.mubr.bf16.gmra.mrb[0].mxu0 %v291
    %v410 = vpop.f32.mrb[0].mxu0
    %v411 = vadd.f32 %v106, %v410
    %v412 = vpop.f32.mrb[0].mxu0
    %v413 = vadd.f32 %v106, %v412
    %v414 = vpop.f32.mrb[0].mxu0
    %v415 = vadd.f32 %v111, %v414
    %v416 = vpop.f32.mrb[0].mxu0
    %v417 = vadd.f32 %v111, %v416
    %418 = vmatprep.mubr.bf16.mxu0 0
    %419 = vmatmul.mubr.bf16.gmra.mrb[0].mxu0 %v294
    %v420 = vpop.f32.mrb[0].mxu0
    %v421 = vadd.f32 %v116, %v420
    %v422 = vpop.f32.mrb[0].mxu0
    %v423 = vadd.f32 %v116, %v422
    %v424 = vpop.f32.mrb[0].mxu0
    %v425 = vadd.f32 %v121, %v424
    %v426 = vpop.f32.mrb[0].mxu0
    %v427 = vadd.f32 %v121, %v426
    %428 = vmatprep.mubr.bf16.mxu0 0
    %429 = vmatmul.mubr.bf16.gmra.mrb[0].mxu0 %v297
    %v430 = vpop.f32.mrb[0].mxu0
    %v431 = vadd.f32 %v126, %v430
    %v432 = vpop.f32.mrb[0].mxu0
    %v433 = vadd.f32 %v126, %v432
    %v434 = vpop.f32.mrb[0].mxu0
    %v435 = vadd.f32 %v131, %v434
    %v436 = vpop.f32.mrb[0].mxu0
    %v437 = vadd.f32 %v131, %v436
    %438 = vmatprep.mubr.bf16.mxu0 0
    %439 = vmatmul.mubr.bf16.gmra.mrb[0].mxu0 %v300
    %v440 = vpop.f32.mrb[0].mxu0
    %v441 = vadd.f32 %v136, %v440
    %v442 = vpop.f32.mrb[0].mxu0
    %v443 = vadd.f32 %v136, %v442
    %v444 = vpop.f32.mrb[0].mxu0
    %v445 = vadd.f32 %v141, %v444
    %v446 = vpop.f32.mrb[0].mxu0
    %v447 = vadd.f32 %v141, %v446
    %448 = vmatprep.mubr.bf16.mxu0 0
    %449 = vmatmul.mubr.bf16.gmra.mrb[0].mxu0 %v303
    %v450 = vpop.f32.mrb[0].mxu0
    %v451 = vadd.f32 %v146, %v450
    %v452 = vpop.f32.mrb[0].mxu0
    %v453 = vadd.f32 %v146, %v452
    %v454 = vpop.f32.mrb[0].mxu0
    %v455 = vadd.f32 %v151, %v454
    %v456 = vpop.f32.mrb[0].mxu0
    %v457 = vadd.f32 %v151, %v456
    %458 = vmatprep.mubr.bf16.mxu0 0
    %459 = vmatmul.mubr.bf16.gmra.mrb[0].mxu0 %v306
    %v460 = vpop.f32.mrb[0].mxu0
    %v461 = vadd.f32 %v156, %v460
    %v462 = vpop.f32.mrb[0].mxu0
    %v463 = vadd.f32 %v156, %v462
    %v464 = vpop.f32.mrb[0].mxu0
    %v465 = vadd.f32 %v161, %v464
    %v466 = vpop.f32.mrb[0].mxu0
    %v467 = vadd.f32 %v161, %v466
    %468 = vdwg.mxu0
    %v469 = vmax.f32 %v391, 0.0
    %v470 = vmax.f32 %v393, 0.0
    %v471 = vmax.f32 %v395, 0.0
    %v472 = vmax.f32 %v397, 0.0
    %v473 = vmax.f32 %v401, 0.0
    %v474 = vmax.f32 %v403, 0.0
    %v475 = vmax.f32 %v405, 0.0
    %v476 = vmax.f32 %v407, 0.0
    %v477 = vmax.f32 %v411, 0.0
    %v478 = vmax.f32 %v413, 0.0
    %v479 = vmax.f32 %v415, 0.0
    %v480 = vmax.f32 %v417, 0.0
    %v481 = vmax.f32 %v421, 0.0
    %v482 = vmax.f32 %v423, 0.0
    %v483 = vmax.f32 %v425, 0.0
    %v484 = vmax.f32 %v427, 0.0
    %v485 = vmax.f32 %v431, 0.0
    %v486 = vmax.f32 %v433, 0.0
    %v487 = vmax.f32 %v435, 0.0
    %v488 = vmax.f32 %v437, 0.0
    %v489 = vmax.f32 %v441, 0.0
    %v490 = vmax.f32 %v443, 0.0
    %v491 = vmax.f32 %v445, 0.0
    %v492 = vmax.f32 %v447, 0.0
    %v493 = vmax.f32 %v451, 0.0
    %v494 = vmax.f32 %v453, 0.0
    %v495 = vmax.f32 %v455, 0.0
    %v496 = vmax.f32 %v457, 0.0
    %v497 = vmax.f32 %v461, 0.0
    %v498 = vmax.f32 %v463, 0.0
    %v499 = vmax.f32 %v465, 0.0
    %v500 = vmax.f32 %v467, 0.0
    %v501 = vld [vmem:[%s2] sm:$0xf]
    %v502 = vld [vmem:[%s2 + $0x4] sm:$0xf]
    %v503 = vld [vmem:[%s2 + $0x8] sm:$0xf]
    %v504 = vld [vmem:[%s2 + $0xc] sm:$0xf]
    %v505 = vld [vmem:[%s2 + $0x10] sm:$0xf]
    %v506 = vld [vmem:[%s2 + $0x14] sm:$0xf]
    %v507 = vld [vmem:[%s2 + $0x18] sm:$0xf]
    %v508 = vld [vmem:[%s2 + $0x1c] sm:$0xf]
    %v509 = vpack.c.bf16 %v471, %v469
    %v510 = vpack.c.bf16 %v472, %v470
    %v511 = vpack.c.bf16 %v475, %v473
    %v512 = vpack.c.bf16 %v476, %v474
    %v513 = vpack.c.bf16 %v479, %v477
    %v514 = vpack.c.bf16 %v480, %v478
    %v515 = vpack.c.bf16 %v483, %v481
    %v516 = vpack.c.bf16 %v484, %v482
    %v517 = vpack.c.bf16 %v487, %v485
    %v518 = vpack.c.bf16 %v488, %v486
    %v519 = vpack.c.bf16 %v491, %v489
    %v520 = vpack.c.bf16 %v492, %v490
    %v521 = vpack.c.bf16 %v495, %v493
    %v522 = vpack.c.bf16 %v496, %v494
    %v523 = vpack.c.bf16 %v499, %v497
    %v524 = vpack.c.bf16 %v500, %v498
    %v525 = vld [vmem:[%s3 + $0x80] sm:$0xff]
    %v526 = vld [vmem:[%s3 + $0x88] sm:$0xff]
    %v527 = vld [vmem:[%s3 + $0x90] sm:$0xff]
    %v528 = vld [vmem:[%s3 + $0x98] sm:$0xff]
    %v529 = vld [vmem:[%s3 + $0xa0] sm:$0xff]
    %v530 = vld [vmem:[%s3 + $0xa8] sm:$0xff]
    %v531 = vld [vmem:[%s3 + $0xb0] sm:$0xff]
    %v532 = vld [vmem:[%s3 + $0xb8] sm:$0xff]
    %534 = vset.pattern.permute.xlu0 0
    %535 = vperm.xlu0 %534, %v525
    %v536 = vpop.permute.xlu0 %535
    %539 = vset.pattern.permute.xlu0 0
    %540 = vperm.xlu0 %539, %v526
    %v541 = vpop.permute.xlu0 %540
    %544 = vset.pattern.permute.xlu0 0
    %545 = vperm.xlu0 %544, %v527
    %v546 = vpop.permute.xlu0 %545
    %549 = vset.pattern.permute.xlu0 0
    %550 = vperm.xlu0 %549, %v528
    %v551 = vpop.permute.xlu0 %550
    %554 = vset.pattern.permute.xlu0 0
    %555 = vperm.xlu0 %554, %v529
    %v556 = vpop.permute.xlu0 %555
    %559 = vset.pattern.permute.xlu0 0
    %560 = vperm.xlu0 %559, %v530
    %v561 = vpop.permute.xlu0 %560
    %564 = vset.pattern.permute.xlu0 0
    %565 = vperm.xlu0 %564, %v531
    %v566 = vpop.permute.xlu0 %565
    %569 = vset.pattern.permute.xlu0 0
    %570 = vperm.xlu0 %569, %v532
    %v571 = vpop.permute.xlu0 %570
    %v581 = vunpack.c.l.b16 %v501
    %v582 = vunpack.c.l.b16 %v502
    %v583 = vunpack.c.l.b16 %v503
    %v584 = vunpack.c.l.b16 %v504
    %v585 = vunpack.c.l.b16 %v505
    %v586 = vunpack.c.l.b16 %v506
    %v587 = vunpack.c.l.b16 %v507
    %v588 = vunpack.c.l.b16 %v508
    %v589 = vpack.c.b16 %v582, %v581
    %v590 = vpack.c.b16 %v584, %v583
    %v591 = vpack.c.b16 %v586, %v585
    %v592 = vpack.c.b16 %v588, %v587
    %597 = vmatprep.subr.bf16.mxu0 %v510
    %598 = vmatpush1.bf16.msra.mxu0 %v509
    %599 = vmatprep.subr.bf16.mxu0 %v512
    %600 = vmatpush1.bf16.msra.mxu0 %v511
    %601 = vmatprep.subr.bf16.mxu0 %v514
    %602 = vmatpush1.bf16.msra.mxu0 %v513
    %603 = vmatprep.subr.bf16.mxu0 %v516
    %604 = vmatpush1.bf16.msra.mxu0 %v515
    %605 = vmatprep.subr.bf16.mxu0 %v518
    %606 = vmatpush1.bf16.msra.mxu0 %v517
    %607 = vmatprep.subr.bf16.mxu0 %v520
    %608 = vmatpush1.bf16.msra.mxu0 %v519
    %609 = vmatprep.subr.bf16.mxu0 %v522
    %610 = vmatpush1.bf16.msra.mxu0 %v521
    %611 = vmatprep.subr.bf16.mxu0 %v524
    %612 = vmatpush1.bf16.msra.mxu0 %v523
    %613 = vmatprep.subr.bf16.mxu0 0
    %614 = vmatpush1.bf16.msra.mxu0 0
    %615 = vmatprep.subr.bf16.mxu0 0
    %616 = vmatpush1.bf16.msra.mxu0 0
    %617 = vmatprep.subr.bf16.mxu0 0
    %618 = vmatpush1.bf16.msra.mxu0 0
    %619 = vmatprep.subr.bf16.mxu0 0
    %620 = vmatpush1.bf16.msra.mxu0 0
    %621 = vmatprep.subr.bf16.mxu0 0
    %622 = vmatpush1.bf16.msra.mxu0 0
    %623 = vmatprep.subr.bf16.mxu0 0
    %624 = vmatpush1.bf16.msra.mxu0 0
    %625 = vmatprep.subr.bf16.mxu0 0
    %626 = vmatpush1.bf16.msra.mxu0 0
    %627 = vmatprep.subr.bf16.mxu0 0
    %628 = vmatpush1.bf16.msra.mxu0 0
    %629 = vmatprep.mubr.bf16.mxu0 0
    %630 = vmatmul.mubr.bf16.gmra.mrb[0].mxu0 %v589
    %v631 = vpop.f32.mrb[0].mxu0
    %v632 = vadd.f32 %v536, %v631
    %v633 = vpop.f32.mrb[0].mxu0
    %v634 = vadd.f32 %v536, %v633
    %v635 = vpop.f32.mrb[0].mxu0
    %v636 = vadd.f32 %v541, %v635
    %v637 = vpop.f32.mrb[0].mxu0
    %v638 = vadd.f32 %v541, %v637
    %639 = vmatprep.mubr.bf16.mxu0 0
    %640 = vmatmul.mubr.bf16.gmra.mrb[0].mxu0 %v590
    %v641 = vpop.f32.mrb[0].mxu0
    %v642 = vadd.f32 %v546, %v641
    %v643 = vpop.f32.mrb[0].mxu0
    %v644 = vadd.f32 %v546, %v643
    %v645 = vpop.f32.mrb[0].mxu0
    %v646 = vadd.f32 %v551, %v645
    %v647 = vpop.f32.mrb[0].mxu0
    %v648 = vadd.f32 %v551, %v647
    %649 = vmatprep.mubr.bf16.mxu0 0
    %650 = vmatmul.mubr.bf16.gmra.mrb[0].mxu0 %v591
    %v651 = vpop.f32.mrb[0].mxu0
    %v652 = vadd.f32 %v556, %v651
    %v653 = vpop.f32.mrb[0].mxu0
    %v654 = vadd.f32 %v556, %v653
    %v655 = vpop.f32.mrb[0].mxu0
    %v656 = vadd.f32 %v561, %v655
    %v657 = vpop.f32.mrb[0].mxu0
    %v658 = vadd.f32 %v561, %v657
    %659 = vmatprep.mubr.bf16.mxu0 0
    %660 = vmatmul.mubr.bf16.gmra.mrb[0].mxu0 %v592
    %v661 = vpop.f32.mrb[0].mxu0
    %v662 = vadd.f32 %v566, %v661
    %v663 = vpop.f32.mrb[0].mxu0
    %v664 = vadd.f32 %v566, %v663
    %v665 = vpop.f32.mrb[0].mxu0
    %v666 = vadd.f32 %v571, %v665
    %v667 = vpop.f32.mrb[0].mxu0
    %v668 = vadd.f32 %v571, %v667
    %669 = vdwg.mxu0
    %v670 = vmax.f32 %v632, 0.0
    %v671 = vmax.f32 %v634, 0.0
    %v672 = vmax.f32 %v636, 0.0
    %v673 = vmax.f32 %v638, 0.0
    %v674 = vmax.f32 %v642, 0.0
    %v675 = vmax.f32 %v644, 0.0
    %v676 = vmax.f32 %v646, 0.0
    %v677 = vmax.f32 %v648, 0.0
    %v678 = vmax.f32 %v652, 0.0
    %v679 = vmax.f32 %v654, 0.0
    %v680 = vmax.f32 %v656, 0.0
    %v681 = vmax.f32 %v658, 0.0
    %v682 = vmax.f32 %v662, 0.0
    %v683 = vmax.f32 %v664, 0.0
    %v684 = vmax.f32 %v666, 0.0
    %v685 = vmax.f32 %v668, 0.0
    %v686 = vld [vmem:[%s3 + $0xc0] sm:$0xff]
    %v687 = vld [vmem:[%s3 + $0xc8] sm:$0xff]
    %v688 = vld [vmem:[%s3 + $0xd0] sm:$0xff]
    %v689 = vld [vmem:[%s3 + $0xd8] sm:$0xff]
    %v690 = vld [vmem:[%s3 + $0xe0] sm:$0xff]
    %v691 = vld [vmem:[%s3 + $0xe8] sm:$0xff]
    %v692 = vld [vmem:[%s3 + $0xf0] sm:$0xff]
    %v693 = vld [vmem:[%s3 + $0xf8] sm:$0xff]
    %v694 = vld [vmem:[%s3 + $0x100] sm:$0x1]
    %696 = vset.pattern.permute.xlu0 0
    %697 = vperm.xlu0 %696, %v686
    %v698 = vpop.permute.xlu0 %697
    %701 = vset.pattern.permute.xlu0 0
    %702 = vperm.xlu0 %701, %v687
    %v703 = vpop.permute.xlu0 %702
    %706 = vset.pattern.permute.xlu0 0
    %707 = vperm.xlu0 %706, %v688
    %v708 = vpop.permute.xlu0 %707
    %711 = vset.pattern.permute.xlu0 0
    %712 = vperm.xlu0 %711, %v689
    %v713 = vpop.permute.xlu0 %712
    %716 = vset.pattern.permute.xlu0 0
    %717 = vperm.xlu0 %716, %v690
    %v718 = vpop.permute.xlu0 %717
    %721 = vset.pattern.permute.xlu0 0
    %722 = vperm.xlu0 %721, %v691
    %v723 = vpop.permute.xlu0 %722
    %726 = vset.pattern.permute.xlu0 0
    %727 = vperm.xlu0 %726, %v692
    %v728 = vpop.permute.xlu0 %727
    %731 = vset.pattern.permute.xlu0 0
    %732 = vperm.xlu0 %731, %v693
    %v733 = vpop.permute.xlu0 %732
    %v735 = vmul.f32 %v670, %v698
    %v736 = vmul.f32 %v671, %v698
    %v737 = vmul.f32 %v672, %v703
    %v738 = vmul.f32 %v673, %v703
    %v739 = vmul.f32 %v674, %v708
    %v740 = vmul.f32 %v675, %v708
    %v741 = vmul.f32 %v676, %v713
    %v742 = vmul.f32 %v677, %v713
    %v743 = vmul.f32 %v678, %v718
    %v744 = vmul.f32 %v679, %v718
    %v745 = vmul.f32 %v680, %v723
    %v746 = vmul.f32 %v681, %v723
    %v747 = vmul.f32 %v682, %v728
    %v748 = vmul.f32 %v683, %v728
    %v749 = vmul.f32 %v684, %v733
    %v750 = vmul.f32 %v685, %v733
    %v751 = vadd.f32 %v735, %v737
    %v752 = vadd.f32 %v751, %v739
    %v753 = vadd.f32 %v752, %v741
    %v754 = vadd.f32 %v753, %v743
    %v755 = vadd.f32 %v754, %v745
    %v756 = vadd.f32 %v755, %v747
    %v757 = vadd.f32 %v756, %v749
    %v758 = vrot.slane %v757, 4
    %v759 = vadd.f32 %v757, %v758
    %v760 = vrot.slane %v759, 2
    %v761 = vadd.f32 %v759, %v760
    %v762 = vrot.slane %v761, 1
    %v763 = vadd.f32 %v761, %v762
    %v764 = vadd.f32 %v736, %v738
    %v765 = vadd.f32 %v764, %v740
    %v766 = vadd.f32 %v765, %v742
    %v767 = vadd.f32 %v766, %v744
    %v768 = vadd.f32 %v767, %v746
    %v769 = vadd.f32 %v768, %v748
    %v770 = vadd.f32 %v769, %v750
    %v771 = vrot.slane %v770, 4
    %v772 = vadd.f32 %v770, %v771
    %v773 = vrot.slane %v772, 2
    %v774 = vadd.f32 %v772, %v773
    %v775 = vrot.slane %v774, 1
    %v776 = vadd.f32 %v774, %v775
    %778 = vset.pattern.permute.xlu0 0
    %779 = vperm.xlu0 %778, %v694
    %v780 = vpop.permute.xlu0 %779
    %v782 = vadd.f32 %v763, %v780
    %v783 = vadd.f32 %v776, %v780
    %v784 = vxor.u32 %v782, 2147483648
    %v785 = vxor.u32 %v783, 2147483648
    %v786 = vmul.f32 %v784, 1.442695
    %v787 = vpow.pop %v786
    %v788 = vmul.f32 %v785, 1.442695
    %v789 = vpow.pop %v788
    %v790 = vadd.f32 %v787, 1.0
    %v791 = vadd.f32 %v789, 1.0
    %v792 = vrcp.pop %v790
    %v793 = vmul.f32 1.0, %v792
    %v794 = vrcp.pop %v791
    %v795 = vmul.f32 1.0, %v794
    %v798 = vcombine.low %v793, %v795
    %v800 = vunpack.c.l.s4 1966171168
    %v801 = vunpack.c.0.s8 %v800
    %v802 = vlaneseq
    %v803 = vshrl.u32 %v802, 7
    %v804 = vsub.s32 %v801, %v803
    %v805 = vrot.slane %v798, %v804
    %v807 = vunpack.c.l.s4 1966171168
    %v808 = vunpack.c.0.s8 %v807
    %v809 = vlaneseq
    %v810 = vshrl.u32 %v809, 7
    %v811 = vsub.s32 %v808, %v810
    %v812 = vrot.slane %v805, %v811
    %v814 = vlaneseq
    %vm815 = vcmp.ge.s32.totalorder %v814, 0
    %vm816 = vcmp.lt.s32.totalorder %v814, 256
    %vm817 = vmand %vm815, %vm816
    %818 = vst.msk [vmem:[#allocation2] sm:$0x3] %vm817, %v812
    // Predicated region
    $region18: #{tpu_custom_call.1} parent=1 // pred_check
      _
    $region19: #{tpu_custom_call.1} parent=1 // pred_check_branch
      %820 = sbr.rel (0) target = $region21
    $region20: #{tpu_custom_call.1} parent=1 // pred_region
      %s822 = ssub.s32 32, 32
      %823 = vsyncadd [#allocation3], %s822
      %s825 = sshll.u32 [#allocation2], 4
      %s826 = int_to_ptr.vmem [resolvable:$true] %s825
      %828 = dma.vmem_to_hbm [thread:$0]  %s826, 32, %s4, [#allocation3]
    $region21: #{tpu_custom_call.1} parent=1 // pred_fallthru
      _
    // Predicated region
    $region22: #{tpu_custom_call.1} parent=1 // pred_check
      _
    $region23: #{tpu_custom_call.1} parent=1 // pred_check_branch
      %830 = sbr.rel (0) target = $region25
    $region24: #{tpu_custom_call.1} parent=1 // pred_region
      %831 = dma.done [#allocation3], 32
    $region25: #{tpu_custom_call.1} parent=1 // pred_fallthru
      _
    %832 = vsyncpa [#allocation3], 1

</llo_original>
